<compile_context>
chip_gen: v7x
topology: tpu7x:2x2x1
jax: 0.10.0
libtpu: 0.0.40
codegen_flags: <defaults>
</compile_context>

<pallas_src>
import math

import jax
import jax.numpy as jnp
from jax.experimental import pallas as pl
from jax.experimental.pallas import tpu as pltpu


# ---------------------------------------------------------------------------
# Kernels
# ---------------------------------------------------------------------------

def _linear_kernel(x_ref, w_ref, b_ref, o_ref):
    # (R, K) @ (K, N) -> (R, N); weight already host-oriented, f32 MXU accumulation.
    acc = jnp.dot(x_ref[...], w_ref[...], preferred_element_type=jnp.float32)
    o_ref[...] = (acc + b_ref[...]).astype(o_ref.dtype)


def _std_linear_softmax_kernel(x_ref, w_ref, b_ref, o_ref):
    # Standard orientation: one softmax group per row (N = n_actions).
    logits = jnp.dot(x_ref[...], w_ref[...],
                     preferred_element_type=jnp.float32) + b_ref[...]
    m = jnp.max(logits, axis=-1, keepdims=True)       # XLU cross-lane reduce
    e = jnp.exp(logits - m)                           # EUP
    s = jnp.sum(e, axis=-1, keepdims=True)            # XLU
    o_ref[...] = (e / s).astype(o_ref.dtype)          # exact division (review)


def _packed_linear_softmax_kernel(x_ref, w_ref, b_ref, seg_ref, o_ref):
    # Packed orientation: each row holds P batch rows * A actions (lane-dense).
    logits = jnp.dot(x_ref[...], w_ref[...],
                     preferred_element_type=jnp.float32) + b_ref[...]
    # Row-wide max is a constant within every A-lane softmax group, so the
    # softmax result is mathematically unchanged; it only differs from a
    # per-group max by f32 underflow when a group's max is ~80+ below the
    # row max (pathological logit spreads).
    m = jnp.max(logits, axis=-1, keepdims=True)
    e = jnp.exp(logits - m)
    # Segmented (per A-lane group) sums via block-diagonal-ones matmul: MXU slot,
    # broadcasts each group's sum back onto its own lanes.
    s = jnp.dot(e, seg_ref[...], preferred_element_type=jnp.float32)
    o_ref[...] = (e / s).astype(o_ref.dtype)


# ---------------------------------------------------------------------------
# Dispatch helper
# ---------------------------------------------------------------------------

def _clamp_row_tile(row_tile, in_cols, out_cols):
    """Keep double-buffered x+out tiles within ~12 MiB (safe on v5e/v6e/v7x)."""
    budget = 12 * 1024 * 1024
    per_row = (max(in_cols, 128) + max(out_cols, 128)) * 4 * 2
    max_rows = max(8, (budget // per_row) // 8 * 8)
    return max(8, min(row_tile, max_rows))


def _run_head(kernel, x2d, consts, out_cols, *, row_tile, out_dtype, cost_estimate):
    """x2d: (R, K) row-tiled operand; consts: grid-constant 2D operands."""
    R, K = x2d.shape
    row_tile = _clamp_row_tile(row_tile, K, out_cols)
    out_shape = jax.ShapeDtypeStruct((R, out_cols), out_dtype)

    if R <= row_tile:
        # Gridless: single invocation, whole (small) problem resident in VMEM,
        # no per-step grid bookkeeping.
        return pl.pallas_call(
            kernel, out_shape=out_shape, cost_estimate=cost_estimate,
        )(x2d, *consts)

    # Tiled path: batch axis streamed through a grid (partial trailing block is
    # handled by Pallas); weight/bias/seg blocks are grid-constant and stay
    # VMEM-resident; batch axis is "parallel" (dual-TC on v7x).
    in_specs = [pl.BlockSpec((row_tile, K), lambda i: (i, 0))]
    in_specs += [pl.BlockSpec(c.shape, lambda i: (0, 0)) for c in consts]
    return pl.pallas_call(
        kernel,
        out_shape=out_shape,
        grid=(pl.cdiv(R, row_tile),),
        in_specs=in_specs,
        out_specs=pl.BlockSpec((row_tile, out_cols), lambda i: (i, 0)),
        compiler_params=pltpu.CompilerParams(
            dimension_semantics=("parallel",)),
        cost_estimate=cost_estimate,
    )(x2d, *consts)


def _head(state, weight, bias, *, fused_softmax, batch_tile=4096,
          compute_dtype=None):
    """state: (B, C), weight: (A, C) (PyTorch nn.Linear layout), bias: (A,)."""
    B, C = state.shape
    A, C_w = weight.shape
    assert C == C_w, f"feature mismatch: state C={C}, weight C={C_w}"
    out_dtype = state.dtype

    x = state
    w = weight
    if compute_dtype is not None:     # optional HBM-traffic saver; not bit-exact
        x = x.astype(compute_dtype)
        w = w.astype(compute_dtype)
    b2d = bias.astype(jnp.float32).reshape(1, A)

    cost = pl.CostEstimate(
        flops=2 * B * C * A,
        transcendentals=(B * A if fused_softmax else 0),
        bytes_accessed=4 * (B * C + A * C + A + B * A),
    )

    # Lane-dense packing: fold P batch rows per kernel row so output lane width
    # is a multiple of 128.  state/output reshapes are free (contiguous
    # row-major); only the tiny weight is expanded (once, host side).
    P = 128 // math.gcd(A, 128)
    w_pack_bytes = (P * C) * (P * A) * 4
    use_packed = (P > 1 and B % P == 0 and P * C <= 4096
                  and w_pack_bytes <= 4 * 1024 * 1024)

    if use_packed:
        w_pack = jnp.kron(jnp.eye(P, dtype=w.dtype), w.T)     # (P*C, P*A) block-diag
        b_pack = jnp.tile(b2d, (1, P))                        # (1, P*A)
        x_pack = x.reshape(B // P, P * C)                     # free reshape
        row_tile = max(8, batch_tile // P)
        if fused_softmax:
            seg = jnp.kron(jnp.eye(P, dtype=jnp.float32),
                           jnp.ones((A, A), dtype=jnp.float32))   # (P*A, P*A)
            out = _run_head(_packed_linear_softmax_kernel, x_pack,
                            (w_pack, b_pack, seg), P * A,
                            row_tile=row_tile, out_dtype=out_dtype,
                            cost_estimate=cost)
        else:
            out = _run_head(_linear_kernel, x_pack, (w_pack, b_pack), P * A,
                            row_tile=row_tile, out_dtype=out_dtype,
                            cost_estimate=cost)
        return out.reshape(B, A)                              # free reshape

    # Fallback: standard (B, A) orientation.  Weight pre-transposed once on the
    # host (1 KiB) so no in-kernel relayout can be emitted.
    w_t = w.T
    kern = _std_linear_softmax_kernel if fused_softmax else _linear_kernel
    return _run_head(kern, x, (w_t, b2d), A, row_tile=batch_tile,
                     out_dtype=out_dtype, cost_estimate=cost)


# ---------------------------------------------------------------------------
# Public API (mirrors the PyTorch module)
# ---------------------------------------------------------------------------

def fc_softmax_policy_forward(state, weight, bias, *, batch_tile=4096,
                              compute_dtype=None):
    """Equivalent of FCSoftmaxPolicy.forward: returns logits (B, A)."""
    return _head(state, weight, bias, fused_softmax=False,
                 batch_tile=batch_tile, compute_dtype=compute_dtype)


def fc_softmax_policy_compute_policy(state, weight, bias, *, batch_tile=4096,
                                     compute_dtype=None):
    """Fused linear + softmax: returns action probabilities (B, A)."""
    # TODO(synk): SoftmaxPolicy.logits2policy returns a distribution object
    # (sampling/log_prob/entropy); only the softmax probabilities are fused here.
    return _head(state, weight, bias, fused_softmax=True,
                 batch_tile=batch_tile, compute_dtype=compute_dtype)


# ---------------------------------------------------------------------------
# Self-test
# ---------------------------------------------------------------------------

if __name__ == "__main__":
    n_input_channels = 32
    n_actions = 8

    key = jax.random.PRNGKey(0)
    k_w, k_b, k1, k2, k3 = jax.random.split(key, 5)

    weight = jax.random.normal(
        k_w, (n_actions, n_input_channels), dtype=jnp.float32) * 0.1
    bias = jax.random.normal(k_b, (n_actions,), dtype=jnp.float32) * 0.1

    def ref_logits(x):
        return x @ weight.T + bias

    def ref_probs(x):
        return jax.nn.softmax(ref_logits(x), axis=-1)

    def check(x, atol):
        logits = fc_softmax_policy_forward(x, weight, bias)
        probs = fc_softmax_policy_compute_policy(x, weight, bias)
        jax.block_until_ready((logits, probs))
        assert logits.shape == (x.shape[0], n_actions)
        assert probs.shape == (x.shape[0], n_actions)
        assert jnp.allclose(logits, ref_logits(x), atol=atol, rtol=atol)
        assert jnp.allclose(probs, ref_probs(x), atol=atol, rtol=atol)
        assert jnp.allclose(jnp.sum(probs, axis=-1), 1.0, atol=1e-4)

    # 1) tiny batch (B=2): gridless, standard-orientation fallback (B % 16 != 0).
    x_small = jax.random.normal(k1, (2, n_input_channels), dtype=jnp.float32)
    check(x_small, atol=1e-4)

    # 2) small divisible batch (B=64): gridless, lane-dense packed path.
    x_mid = jax.random.normal(k2, (64, n_input_channels), dtype=jnp.float32)
    check(x_mid, atol=1e-4)

    # 3) large batch with a partial trailing tile (B=8704 > 4096, not a multiple
    #    of the tile): tiled "parallel" grid, lane-dense packed path.
    x_big = jax.random.normal(k3, (8704, n_input_channels), dtype=jnp.float32)
    check(x_big, atol=1e-4)

    # 4) optional bf16 compute path (HBM-roofline saver; looser numerics).
    logits_bf16 = fc_softmax_policy_forward(x_mid, weight, bias,
                                            compute_dtype=jnp.bfloat16)
    jax.block_until_ready(logits_bf16)
    assert logits_bf16.shape == (64, n_actions)
    assert jnp.allclose(logits_bf16, ref_logits(x_mid), atol=0.05, rtol=0.05)

    print("KERNEL_OK")
</pallas_src>

<mosaic_0001>
module attributes {stable_mosaic.version = 11 : i64} {
  func.func @_linear_kernel(%arg0: memref<2x32xf32, #tpu.memory_space<vmem>>, %arg1: memref<32x8xf32, #tpu.memory_space<vmem>>, %arg2: memref<1x8xf32, #tpu.memory_space<vmem>>, %arg3: memref<2x8xf32, #tpu.memory_space<vmem>>) attributes {dimension_semantics = [], scalar_prefetch = 0 : i64, scratch_operands = 0 : i64, tpu.core_type = #tpu.core_type<tc>} {
    %c0 = arith.constant 0 : index
    %c0_0 = arith.constant 0 : index
    %0 = vector.load %arg0[%c0, %c0_0] : memref<2x32xf32, #tpu.memory_space<vmem>>, vector<2x32xf32>
    %c0_1 = arith.constant 0 : index
    %c0_2 = arith.constant 0 : index
    %1 = vector.load %arg1[%c0_1, %c0_2] : memref<32x8xf32, #tpu.memory_space<vmem>>, vector<32x8xf32>
    %cst = arith.constant dense<0.000000e+00> : vector<2x8xf32>
    %2 = tpu.matmul %0, %1, %cst {dimension_numbers = #tpu.dot_dimension_numbers<[1], [0], [0], [1], [0, 0, 1, 1], [], []>} : vector<2x32xf32>, vector<32x8xf32>, vector<2x8xf32> -> vector<2x8xf32>
    %c0_3 = arith.constant 0 : index
    %c0_4 = arith.constant 0 : index
    %3 = vector.load %arg2[%c0_3, %c0_4] : memref<1x8xf32, #tpu.memory_space<vmem>>, vector<1x8xf32>
    %4 = vector.broadcast %3 : vector<1x8xf32> to vector<2x8xf32>
    %5 = arith.addf %2, %4 : vector<2x8xf32>
    %c0_5 = arith.constant 0 : index
    %c0_6 = arith.constant 0 : index
    %6 = vector.load %arg3[%c0_5, %c0_6] : memref<2x8xf32, #tpu.memory_space<vmem>>, vector<2x8xf32>
    tpu.vector_store %arg3[%c0_5, %c0_6], %5 {strides = array<i32>} : memref<2x8xf32, #tpu.memory_space<vmem>>, vector<2x8xf32>,
    return
  }
}

</mosaic_0001>

<llo_original>
// kernel: tpu_custom_call.1
$region0: #{tpu_custom_call.1}
  #allocation0 [shape = 'u32[]', space=smem, size = 0x4, offset = 0x4, fixed_abs, tag = 'smem constant byte address 0x4 - core index']
  #allocation1 [shape = 'u32[144,128]{1,0:T(1,128)}', space=vmem, size = 0x12000, scoped, tag = 'internal scratch']
  %s0 = inlined_call_operand.vmem [shape: f32[2,32], index: 0, kind: input, shape index: {}]
  %s1 = inlined_call_operand.vmem [shape: f32[32,8], index: 1, kind: input, shape index: {}]
  %s2 = inlined_call_operand.vmem [shape: f32[1,8], index: 2, kind: input, shape index: {}]
  %s3 = inlined_call_operand.hbm [shape: f32[2,8], index: 3, kind: output, shape index: {}]
  %s4 = sld [smem:[#allocation0]]
  $region22: #{tpu_custom_call.1} parent=0
    _
  %s6 = ssub.s32 1, %s4
  %s7 = scalar_select 0, %s6, %s4
  $region1: #{tpu_custom_call.1} parent=0
    #allocation2 [shape = 'u8[1024]{0}', space=vmem, size = 0x400, scoped, tag = 'output window, operand 0, single buffered']
    #allocation3 [shape = 's32[1]{0}', space=sflag, size = 0x4, scoped, tag = 'scoped memory for tpu_custom_call.1']
    %8 = vsyncpa [#allocation3], 0
    // Predicated region
    $region2: #{tpu_custom_call.1} parent=1 // pred_check
      _
    $region3: #{tpu_custom_call.1} parent=1 // pred_check_branch
      %10 = sbr.rel (0) target = $region5
    $region4: #{tpu_custom_call.1} parent=1 // pred_region
      _
    $region5: #{tpu_custom_call.1} parent=1 // pred_fallthru
      _
    // Predicated region
    $region6: #{tpu_custom_call.1} parent=1 // pred_check
      _
    $region7: #{tpu_custom_call.1} parent=1 // pred_check_branch
      %12 = sbr.rel (0) target = $region9
    $region8: #{tpu_custom_call.1} parent=1 // pred_region
      _
    $region9: #{tpu_custom_call.1} parent=1 // pred_fallthru
      _
    // Predicated region
    $region10: #{tpu_custom_call.1} parent=1 // pred_check
      _
    $region11: #{tpu_custom_call.1} parent=1 // pred_check_branch
      %14 = sbr.rel (0) target = $region13
    $region12: #{tpu_custom_call.1} parent=1 // pred_region
      _
    $region13: #{tpu_custom_call.1} parent=1 // pred_fallthru
      _
    %v15 = vld [vmem:[%s0] sm:$0x3]
    %v16 = vld [vmem:[%s1] sm:$0xff]
    %v17 = vld [vmem:[%s1 + $0x8] sm:$0xff]
    %v18 = vld [vmem:[%s1 + $0x10] sm:$0xff]
    %v19 = vld [vmem:[%s1 + $0x18] sm:$0xff]
    %v20 = vld [vmem:[%s2] sm:$0x1]
    %v22 = vlaneseq
    %v23 = vshrl.u32 %v22, 7
    %v24 = vsub.s32 0, %v23
    %v25 = vrot.slane %v20, %v24
    %vm27 = vcmask 261120
    %v29 = vsel %vm27, %v15, 0
    %31 = vmatprep.subr.mxu0 0.0
    %32 = vmatpush1.msra.mxu0 %v16
    %33 = vmatprep.subr.mxu0 0.0
    %34 = vmatpush1.msra.mxu0 %v17
    %35 = vmatprep.subr.mxu0 0.0
    %36 = vmatpush1.msra.mxu0 %v18
    %37 = vmatprep.subr.mxu0 0.0
    %38 = vmatpush1.msra.mxu0 %v19
    %39 = vmatprep.subr.mxu0 0.0
    %40 = vmatpush1.msra.mxu0 0.0
    %41 = vmatprep.subr.mxu0 0.0
    %42 = vmatpush1.msra.mxu0 0.0
    %43 = vmatprep.subr.mxu0 0.0
    %44 = vmatpush1.msra.mxu0 0.0
    %45 = vmatprep.subr.mxu0 0.0
    %46 = vmatpush1.msra.mxu0 0.0
    %47 = vmatprep.subr.mxu0 0.0
    %48 = vmatpush1.msra.mxu0 0.0
    %49 = vmatprep.subr.mxu0 0.0
    %50 = vmatpush1.msra.mxu0 0.0
    %51 = vmatprep.subr.mxu0 0.0
    %52 = vmatpush1.msra.mxu0 0.0
    %53 = vmatprep.subr.mxu0 0.0
    %54 = vmatpush1.msra.mxu0 0.0
    %55 = vmatprep.subr.mxu0 0.0
    %56 = vmatpush1.msra.mxu0 0.0
    %57 = vmatprep.subr.mxu0 0.0
    %58 = vmatpush1.msra.mxu0 0.0
    %59 = vmatprep.subr.mxu0 0.0
    %60 = vmatpush1.msra.mxu0 0.0
    %61 = vmatprep.subr.mxu0 0.0
    %62 = vmatpush1.msra.mxu0 0.0
    %63 = vmatprep.subr.mxu0 0.0
    %64 = vmatpush1.msra.mxu0 0.0
    %65 = vmatprep.subr.mxu0 0.0
    %66 = vmatpush1.msra.mxu0 0.0
    %67 = vmatprep.subr.mxu0 0.0
    %68 = vmatpush1.msra.mxu0 0.0
    %69 = vmatprep.subr.mxu0 0.0
    %70 = vmatpush1.msra.mxu0 0.0
    %71 = vmatprep.subr.mxu0 0.0
    %72 = vmatpush1.msra.mxu0 0.0
    %73 = vmatprep.subr.mxu0 0.0
    %74 = vmatpush1.msra.mxu0 0.0
    %75 = vmatprep.subr.mxu0 0.0
    %76 = vmatpush1.msra.mxu0 0.0
    %77 = vmatprep.subr.mxu0 0.0
    %78 = vmatpush1.msra.mxu0 0.0
    %79 = vmatprep.subr.mxu0 0.0
    %80 = vmatpush1.msra.mxu0 0.0
    %81 = vmatprep.subr.mxu0 0.0
    %82 = vmatpush1.msra.mxu0 0.0
    %83 = vmatprep.subr.mxu0 0.0
    %84 = vmatpush1.msra.mxu0 0.0
    %85 = vmatprep.subr.mxu0 0.0
    %86 = vmatpush1.msra.mxu0 0.0
    %87 = vmatprep.subr.mxu0 0.0
    %88 = vmatpush1.msra.mxu0 0.0
    %89 = vmatprep.subr.mxu0 0.0
    %90 = vmatpush1.msra.mxu0 0.0
    %91 = vmatprep.subr.mxu0 0.0
    %92 = vmatpush1.msra.mxu0 0.0
    %93 = vmatprep.subr.mxu0 0.0
    %94 = vmatpush1.msra.mxu0 0.0
    %95 = vmatprep.mubr.f32.mxu0 0.0
    %96 = vmatmul.mubr.f32.gmra.mrb[0].mxu0 %v29
    %v97 = vpop.f32.mrb[0].mxu0
    %v98 = vadd.f32 %v25, %v97
    %v99 = vpop.f32.mrb[0].mxu0
    %100 = vdwg.mxu0
    %vm101 = vcmask 58368
    %102 = vst.msk [vmem:[#allocation2] sm:$0x3] %vm101, %v98
    // Predicated region
    $region14: #{tpu_custom_call.1} parent=1 // pred_check
      _
    $region15: #{tpu_custom_call.1} parent=1 // pred_check_branch
      %104 = sbr.rel (0) target = $region17
    $region16: #{tpu_custom_call.1} parent=1 // pred_region
      %s106 = ssub.s32 32, 32
      %107 = vsyncadd [#allocation3], %s106
      %s109 = sshll.u32 [#allocation2], 4
      %s110 = int_to_ptr.vmem [resolvable:$true] %s109
      %112 = dma.vmem_to_hbm [thread:$0]  %s110, 32, %s3, [#allocation3]
    $region17: #{tpu_custom_call.1} parent=1 // pred_fallthru
      _
    // Predicated region
    $region18: #{tpu_custom_call.1} parent=1 // pred_check
      _
    $region19: #{tpu_custom_call.1} parent=1 // pred_check_branch
      %114 = sbr.rel (0) target = $region21
    $region20: #{tpu_custom_call.1} parent=1 // pred_region
      %115 = dma.done [#allocation3], 32
    $region21: #{tpu_custom_call.1} parent=1 // pred_fallthru
      _
    %116 = vsyncpa [#allocation3], 1

</llo_original>
